<compile_context>
chip_gen: v5e
topology: v5e:2x2
jax: 0.10.0
libtpu: 0.0.40
codegen_flags: <defaults>
</compile_context>

<pallas_src>
import jax
import jax.numpy as jnp
from jax.experimental import pallas as pl
from jax.experimental.pallas import tpu as pltpu


def _round_up(x, m):
    return ((x + m - 1) // m) * m


def head_kernel(f_ref, w1_ref, b1_ref, w2_ref, b2_ref, o_ref):
    # f_ref : (TB, Kp)           bfloat16  -- NCHW-flattened feature tile (Kp = pad128(C*H*W))
    # w1_ref: (Kp, HIDDEN)       bfloat16  -- pool + linear1 fused weight (1/HW folded, repeated HW x)
    # b1_ref: (1, HIDDEN)        float32
    # w2_ref: (HIDDEN, OUT_PAD)  bfloat16  -- linear2 weight.T, zero-padded to 128 lanes
    # b2_ref: (1, OUT_PAD)       float32   -- zero-padded
    # o_ref : (TB, OUT_PAD)      float32   -- lane-dense output tile

    # AdaptiveAvgPool2d((1,1)) + linear1 fused into a single bf16 MXU matmul;
    # the mean accumulates in fp32 inside the MXU (preferred_element_type).
    h = jnp.dot(f_ref[...], w1_ref[...],
                preferred_element_type=jnp.float32) + b1_ref[...]
    h = jnp.maximum(h, 0.0)                                   # ReLU, f32 VPU

    # Dropout(p=0.5): identity in eval/inference mode.
    # TODO(synk): training-mode dropout (stateful PRNG mask) not implemented.

    # linear2 (bf16 MXU operands, f32 accumulate), lane-dense unmasked store.
    out = jnp.dot(h.astype(jnp.bfloat16), w2_ref[...],
                  preferred_element_type=jnp.float32) + b2_ref[...]
    o_ref[...] = out


def prepare_head_params(w1, b1, w2, b2, hw):
    """One-time preprocessing (outside the hot path).
    Fuses AdaptiveAvgPool2d((1,1)) into linear1: w1.T is scaled by 1/HW and
    repeated HW times along the contraction axis so that row c*HW + s holds
    w1[:, c]/HW -- matching the c-major flattening of an NCHW feature map.
    Zero-pads the contraction dim to a multiple of 128 lanes and the output
    dim to 128 lanes; casts MXU operands to bf16.
    w1: (hidden, C), b1: (hidden,), w2: (out, hidden), b2: (out,)  (nn.Linear)."""
    hidden, c = w1.shape
    out_dim = w2.shape[0]
    out_pad = _round_up(max(out_dim, 1), 128)
    k = c * hw
    kp = _round_up(k, 128)

    w1t = jnp.transpose(w1).astype(jnp.float32) / float(hw)          # (C, hidden)
    w1rep = jnp.repeat(w1t, hw, axis=0).astype(jnp.bfloat16)         # (K, hidden)
    if kp != k:
        w1rep = jnp.pad(w1rep, ((0, kp - k), (0, 0)))                # zero rows -> no-op in dot
    b1r = b1.reshape(1, hidden).astype(jnp.float32)
    w2t = jnp.zeros((hidden, out_pad), jnp.bfloat16).at[:, :out_dim].set(
        jnp.transpose(w2).astype(jnp.bfloat16))                      # (hidden, out_pad)
    b2r = jnp.zeros((1, out_pad), jnp.float32).at[:, :out_dim].set(
        b2.astype(jnp.float32))
    return (w1rep, b1r, w2t, b2r), out_dim


def metal_model_head(feat_nchw, params, out_dim, *, training=False, max_tb=512):
    """feat_nchw: (B, C, H, W) feature map (NCHW, as the PyTorch backbone emits).
    params: output of prepare_head_params. Returns (B, out_dim) logits."""
    # Dropout is identity in eval mode; training-mode path intentionally not supported.
    assert not training, "training-mode dropout not implemented"  # TODO(synk): dropout mask
    w1rep, b1r, w2t, b2r = params
    B, C, H, W = feat_nchw.shape
    hw = H * W
    k = C * hw
    kp, hidden = w1rep.shape
    out_pad = w2t.shape[1]

    # NCHW flattens directly to (B, C*H*W): a free reshape, no HBM relayout.
    # Only the bf16 cast remains (XLA can typically fuse it into the producer).
    f = feat_nchw.reshape(B, k).astype(jnp.bfloat16)
    if kp != k:
        f = jnp.pad(f, ((0, 0), (0, kp - k)))                        # lane-pad contraction dim

    # ---- VMEM budget: padded footprints, x2 for default double-buffering ----
    w_bytes_vmem = 2 * (_round_up(kp, 16) * _round_up(hidden, 128) * 2   # w1rep bf16
                        + _round_up(hidden, 16) * out_pad * 2            # w2t  bf16
                        + 8 * _round_up(hidden, 128) * 4                 # b1   f32
                        + 8 * out_pad * 4)                               # b2   f32

    try:
        vmem_phys = pltpu.get_tpu_info().vmem_capacity_bytes
    except Exception:
        vmem_phys = 64 << 20                       # conservative: v7x per-TC physical
    vmem_limit = int(min((vmem_phys * 3) // 4, 96 << 20))
    budget = vmem_limit - (4 << 20)                # headroom for compiler scratch

    def tile_bytes(tb):
        f_blk = _round_up(tb, 16) * kp * 2         # bf16 feature block (lane-dense)
        o_blk = _round_up(tb, 8) * out_pad * 4     # f32 output block
        return 2 * (f_blk + o_blk) + w_bytes_vmem

    tb = _round_up(min(max_tb, _round_up(B, 8)), 8)
    while tb > 8 and tile_bytes(tb) > budget:
        tb = _round_up(tb // 2, 8)
    tb = max(tb, 8)
    # v7x megacore: prefer >= 2 grid tiles whenever the batch allows it, so the
    # "parallel" grid axis actually gives both TensorCores work.
    if B > 8 and pl.cdiv(B, tb) < 2:
        tb = max(8, _round_up(pl.cdiv(B, 2), 8))

    nb = pl.cdiv(B, tb)
    b_pad = nb * tb
    if b_pad != B:
        f = jnp.pad(f, ((0, b_pad - B), (0, 0)))

    cost = pl.CostEstimate(
        flops=b_pad * 2 * (kp * hidden + hidden * out_pad),
        transcendentals=0,
        bytes_accessed=b_pad * kp * 2 + w_bytes_vmem // 2 + b_pad * out_pad * 4,
    )

    out_full = pl.pallas_call(
        head_kernel,
        out_shape=jax.ShapeDtypeStruct((b_pad, out_pad), jnp.float32),
        grid=(nb,),
        in_specs=[
            pl.BlockSpec((tb, kp), lambda b: (b, 0)),          # feature tiles (pipelined)
            pl.BlockSpec((kp, hidden), lambda b: (0, 0)),      # weights stay resident
            pl.BlockSpec((1, hidden), lambda b: (0, 0)),
            pl.BlockSpec((hidden, out_pad), lambda b: (0, 0)),
            pl.BlockSpec((1, out_pad), lambda b: (0, 0)),
        ],
        out_specs=pl.BlockSpec((tb, out_pad), lambda b: (b, 0)),  # lane-dense output
        compiler_params=pltpu.CompilerParams(
            dimension_semantics=("parallel",),                    # megacore batch split
            vmem_limit_bytes=vmem_limit),
        cost_estimate=cost,
    )(f, w1rep, b1r, w2t, b2r)

    return out_full[:B, :out_dim]


def _reference(feat_nchw, w1, b1, w2, b2):
    pooled = jnp.mean(feat_nchw, axis=(2, 3))                     # AdaptiveAvgPool2d((1,1))
    h = jnp.maximum(pooled @ w1.T + b1, 0.0)                      # relu(linear1)
    return h @ w2.T + b2                                          # linear2


if __name__ == "__main__":
    # Small shapes consistent with the module: dim_feats=C=32 (backbone feature
    # channels), hidden_dim=32, output_class=15, feature map 8x8, batch=2.
    B, C, H, W = 2, 32, 8, 8
    HIDDEN, OUT = 32, 15

    key = jax.random.PRNGKey(0)
    k_f, k_w1, k_b1, k_w2, k_b2 = jax.random.split(key, 5)

    feat = jax.random.normal(k_f, (B, C, H, W), dtype=jnp.float32)
    # Deterministic parameter init (uniform in +/- 1/sqrt(fan_in), like nn.Linear).
    w1 = jax.random.uniform(k_w1, (HIDDEN, C), jnp.float32, -1.0, 1.0) / jnp.sqrt(C)
    b1 = jax.random.uniform(k_b1, (HIDDEN,), jnp.float32, -1.0, 1.0) / jnp.sqrt(C)
    w2 = jax.random.uniform(k_w2, (OUT, HIDDEN), jnp.float32, -1.0, 1.0) / jnp.sqrt(HIDDEN)
    b2 = jax.random.uniform(k_b2, (OUT,), jnp.float32, -1.0, 1.0) / jnp.sqrt(HIDDEN)

    # One-time parameter preprocessing (kept out of the per-call hot path).
    params, out_dim = prepare_head_params(w1, b1, w2, b2, hw=H * W)

    out = metal_model_head(feat, params, out_dim)
    out = jax.block_until_ready(out)

    ref = _reference(feat, w1, b1, w2, b2)
    assert out.shape == (B, OUT)
    # bf16 MXU operands with fp32 accumulation -> bf16-appropriate tolerance.
    assert jnp.allclose(out, ref, atol=2e-2, rtol=2e-2), "mismatch vs reference"

    print("KERNEL_OK")
</pallas_src>

<mosaic_0001>
module attributes {stable_mosaic.version = 11 : i64} {
  func.func @head_kernel(%arg0: i32, %arg1: memref<8x2048xbf16, #tpu.memory_space<vmem>>, %arg2: memref<2048x32xbf16, #tpu.memory_space<vmem>>, %arg3: memref<1x32xf32, #tpu.memory_space<vmem>>, %arg4: memref<32x128xbf16, #tpu.memory_space<vmem>>, %arg5: memref<1x128xf32, #tpu.memory_space<vmem>>, %arg6: memref<8x128xf32, #tpu.memory_space<vmem>>) attributes {dimension_semantics = [#tpu.dimension_semantics<parallel>], iteration_bounds = array<i64: 1>, scalar_prefetch = 0 : i64, scratch_operands = 0 : i64, tpu.core_type = #tpu.core_type<tc>, window_params = [{transform_indices = @transform_0, window_bounds = array<i64: 8, 2048>}, {pipeline_mode = #tpu.pipeline_mode<synchronous>, transform_indices = @transform_1, window_bounds = array<i64: 2048, 32>}, {pipeline_mode = #tpu.pipeline_mode<synchronous>, transform_indices = @transform_2, window_bounds = array<i64: 1, 32>}, {pipeline_mode = #tpu.pipeline_mode<synchronous>, transform_indices = @transform_3, window_bounds = array<i64: 32, 128>}, {pipeline_mode = #tpu.pipeline_mode<synchronous>, transform_indices = @transform_4, window_bounds = array<i64: 1, 128>}, {transform_indices = @transform_5, window_bounds = array<i64: 8, 128>}]} {
    %c0 = arith.constant 0 : index
    %c0_0 = arith.constant 0 : index
    %0 = vector.load %arg1[%c0, %c0_0] : memref<8x2048xbf16, #tpu.memory_space<vmem>>, vector<8x2048xbf16>
    %c0_1 = arith.constant 0 : index
    %c0_2 = arith.constant 0 : index
    %1 = vector.load %arg2[%c0_1, %c0_2] : memref<2048x32xbf16, #tpu.memory_space<vmem>>, vector<2048x32xbf16>
    %cst = arith.constant dense<0.000000e+00> : vector<8x32xf32>
    %2 = tpu.matmul %0, %1, %cst {dimension_numbers = #tpu.dot_dimension_numbers<[1], [0], [0], [1], [0, 0, 1, 1], [], []>} : vector<8x2048xbf16>, vector<2048x32xbf16>, vector<8x32xf32> -> vector<8x32xf32>
    %c0_3 = arith.constant 0 : index
    %c0_4 = arith.constant 0 : index
    %3 = vector.load %arg3[%c0_3, %c0_4] : memref<1x32xf32, #tpu.memory_space<vmem>>, vector<1x32xf32>
    %4 = vector.broadcast %3 : vector<1x32xf32> to vector<8x32xf32>
    %5 = arith.addf %2, %4 : vector<8x32xf32>
    %cst_5 = arith.constant 0.000000e+00 : f32
    %6 = vector.broadcast %cst_5 : f32 to vector<8x32xf32>
    %7 = arith.maximumf %5, %6 : vector<8x32xf32>
    %8 = arith.truncf %7 : vector<8x32xf32> to vector<8x32xbf16>
    %c0_6 = arith.constant 0 : index
    %c0_7 = arith.constant 0 : index
    %9 = vector.load %arg4[%c0_6, %c0_7] : memref<32x128xbf16, #tpu.memory_space<vmem>>, vector<32x128xbf16>
    %cst_8 = arith.constant dense<0.000000e+00> : vector<8x128xf32>
    %10 = tpu.matmul %8, %9, %cst_8 {dimension_numbers = #tpu.dot_dimension_numbers<[1], [0], [0], [1], [0, 0, 1, 1], [], []>} : vector<8x32xbf16>, vector<32x128xbf16>, vector<8x128xf32> -> vector<8x128xf32>
    %c0_9 = arith.constant 0 : index
    %c0_10 = arith.constant 0 : index
    %11 = vector.load %arg5[%c0_9, %c0_10] : memref<1x128xf32, #tpu.memory_space<vmem>>, vector<1x128xf32>
    %12 = vector.broadcast %11 : vector<1x128xf32> to vector<8x128xf32>
    %13 = arith.addf %10, %12 : vector<8x128xf32>
    %c0_11 = arith.constant 0 : index
    %c0_12 = arith.constant 0 : index
    %14 = vector.load %arg6[%c0_11, %c0_12] : memref<8x128xf32, #tpu.memory_space<vmem>>, vector<8x128xf32>
    tpu.vector_store %arg6[%c0_11, %c0_12], %13 {strides = array<i32>} : memref<8x128xf32, #tpu.memory_space<vmem>>, vector<8x128xf32>,
    return
  }
  func.func @transform_0(%arg0: i32) -> (i32, i32) {
    %c0_i32 = arith.constant 0 : i32
    %c0_i32_0 = arith.constant 0 : i32
    return %arg0, %c0_i32 : i32, i32
  }
  func.func @transform_1(%arg0: i32) -> (i32, i32) {
    %c0_i32 = arith.constant 0 : i32
    %c0_i32_0 = arith.constant 0 : i32
    %c0_i32_1 = arith.constant 0 : i32
    return %c0_i32, %c0_i32_0 : i32, i32
  }
  func.func @transform_2(%arg0: i32) -> (i32, i32) {
    %c0_i32 = arith.constant 0 : i32
    %c0_i32_0 = arith.constant 0 : i32
    %c0_i32_1 = arith.constant 0 : i32
    return %c0_i32, %c0_i32_0 : i32, i32
  }
  func.func @transform_3(%arg0: i32) -> (i32, i32) {
    %c0_i32 = arith.constant 0 : i32
    %c0_i32_0 = arith.constant 0 : i32
    %c0_i32_1 = arith.constant 0 : i32
    return %c0_i32, %c0_i32_0 : i32, i32
  }
  func.func @transform_4(%arg0: i32) -> (i32, i32) {
    %c0_i32 = arith.constant 0 : i32
    %c0_i32_0 = arith.constant 0 : i32
    %c0_i32_1 = arith.constant 0 : i32
    return %c0_i32, %c0_i32_0 : i32, i32
  }
  func.func @transform_5(%arg0: i32) -> (i32, i32) {
    %c0_i32 = arith.constant 0 : i32
    %c0_i32_0 = arith.constant 0 : i32
    return %arg0, %c0_i32 : i32, i32
  }
}

</mosaic_0001>

<llo_original>
// kernel: tpu_custom_call.1
$region0: #{tpu_custom_call.1}
  #allocation0 [shape = 'u32[]', space=smem, size = 0x4, offset = 0x4, fixed_abs, tag = 'smem constant byte address 0x4 - core index']
  #allocation1 [shape = 'u32[72,128]{1,0:T(1,128)}', space=vmem, size = 0x9000, scoped, tag = 'internal scratch']
  %s0 = inlined_call_operand.vmem [shape: bf16[8,2048], index: 0, kind: input, shape index: {}]
  %s1 = inlined_call_operand.vmem [shape: bf16[2048,32], index: 1, kind: input, shape index: {}]
  %s2 = inlined_call_operand.vmem [shape: f32[1,32], index: 2, kind: input, shape index: {}]
  %s3 = inlined_call_operand.vmem [shape: bf16[32,128], index: 3, kind: input, shape index: {}]
  %s4 = inlined_call_operand.vmem [shape: f32[1,128], index: 4, kind: input, shape index: {}]
  %s5 = inlined_call_operand.hbm [shape: f32[8,128], index: 5, kind: output, shape index: {}]
  %s6 = sld [smem:[#allocation0]]
  $region30: #{tpu_custom_call.1} parent=0
    _
  %s8 = ssub.s32 1, %s6
  %s9 = scalar_select 0, %s8, %s6
  $region1: #{tpu_custom_call.1} parent=0
    #allocation2 [shape = 'u8[4096]{0}', space=vmem, size = 0x1000, scoped, tag = 'output window, operand 0, single buffered']
    #allocation3 [shape = 's32[1]{0}', space=sflag, size = 0x4, scoped, tag = 'scoped memory for tpu_custom_call.1']
    %10 = vsyncpa [#allocation3], 0
    // Predicated region
    $region2: #{tpu_custom_call.1} parent=1 // pred_check
      _
    $region3: #{tpu_custom_call.1} parent=1 // pred_check_branch
      %12 = sbr.rel (0) target = $region5
    $region4: #{tpu_custom_call.1} parent=1 // pred_region
      _
    $region5: #{tpu_custom_call.1} parent=1 // pred_fallthru
      _
    // Predicated region
    $region6: #{tpu_custom_call.1} parent=1 // pred_check
      _
    $region7: #{tpu_custom_call.1} parent=1 // pred_check_branch
      %14 = sbr.rel (0) target = $region9
    $region8: #{tpu_custom_call.1} parent=1 // pred_region
      _
    $region9: #{tpu_custom_call.1} parent=1 // pred_fallthru
      _
    // Predicated region
    $region10: #{tpu_custom_call.1} parent=1 // pred_check
      _
    $region11: #{tpu_custom_call.1} parent=1 // pred_check_branch
      %16 = sbr.rel (0) target = $region13
    $region12: #{tpu_custom_call.1} parent=1 // pred_region
      _
    $region13: #{tpu_custom_call.1} parent=1 // pred_fallthru
      _
    // Predicated region
    $region14: #{tpu_custom_call.1} parent=1 // pred_check
      _
    $region15: #{tpu_custom_call.1} parent=1 // pred_check_branch
      %18 = sbr.rel (0) target = $region17
    $region16: #{tpu_custom_call.1} parent=1 // pred_region
      _
    $region17: #{tpu_custom_call.1} parent=1 // pred_fallthru
      _
    // Predicated region
    $region18: #{tpu_custom_call.1} parent=1 // pred_check
      _
    $region19: #{tpu_custom_call.1} parent=1 // pred_check_branch
      %20 = sbr.rel (0) target = $region21
    $region20: #{tpu_custom_call.1} parent=1 // pred_region
      _
    $region21: #{tpu_custom_call.1} parent=1 // pred_fallthru
      _
    %v22 = vld [vmem:[%s0] sm:$0xff]
    %v23 = vld [vmem:[%s0 + $0x8] sm:$0xff]
    %v24 = vld [vmem:[%s0 + $0x10] sm:$0xff]
    %v25 = vld [vmem:[%s0 + $0x18] sm:$0xff]
    %v26 = vld [vmem:[%s0 + $0x20] sm:$0xff]
    %v27 = vld [vmem:[%s0 + $0x28] sm:$0xff]
    %v28 = vld [vmem:[%s0 + $0x30] sm:$0xff]
    %v29 = vld [vmem:[%s0 + $0x38] sm:$0xff]
    %v30 = vld [vmem:[%s1] sm:$0xf]
    %v31 = vld [vmem:[%s1 + $0x4] sm:$0xf]
    %v32 = vld [vmem:[%s1 + $0x8] sm:$0xf]
    %v33 = vld [vmem:[%s1 + $0xc] sm:$0xf]
    %v34 = vld [vmem:[%s1 + $0x10] sm:$0xf]
    %v35 = vld [vmem:[%s1 + $0x14] sm:$0xf]
    %v36 = vld [vmem:[%s1 + $0x18] sm:$0xf]
    %v37 = vld [vmem:[%s1 + $0x1c] sm:$0xf]
    %v38 = vld [vmem:[%s1 + $0x20] sm:$0xf]
    %v39 = vld [vmem:[%s1 + $0x24] sm:$0xf]
    %v40 = vld [vmem:[%s1 + $0x28] sm:$0xf]
    %v41 = vld [vmem:[%s1 + $0x2c] sm:$0xf]
    %v42 = vld [vmem:[%s1 + $0x30] sm:$0xf]
    %v43 = vld [vmem:[%s1 + $0x34] sm:$0xf]
    %v44 = vld [vmem:[%s1 + $0x38] sm:$0xf]
    %v45 = vld [vmem:[%s1 + $0x3c] sm:$0xf]
    %v46 = vld [vmem:[%s1 + $0x40] sm:$0xf]
    %v47 = vld [vmem:[%s1 + $0x44] sm:$0xf]
    %v48 = vld [vmem:[%s1 + $0x48] sm:$0xf]
    %v49 = vld [vmem:[%s1 + $0x4c] sm:$0xf]
    %v50 = vld [vmem:[%s1 + $0x50] sm:$0xf]
    %v51 = vld [vmem:[%s1 + $0x54] sm:$0xf]
    %v52 = vld [vmem:[%s1 + $0x58] sm:$0xf]
    %v53 = vld [vmem:[%s1 + $0x5c] sm:$0xf]
    %v54 = vld [vmem:[%s1 + $0x60] sm:$0xf]
    %v55 = vld [vmem:[%s1 + $0x64] sm:$0xf]
    %v56 = vld [vmem:[%s1 + $0x68] sm:$0xf]
    %v57 = vld [vmem:[%s1 + $0x6c] sm:$0xf]
    %v58 = vld [vmem:[%s1 + $0x70] sm:$0xf]
    %v59 = vld [vmem:[%s1 + $0x74] sm:$0xf]
    %v60 = vld [vmem:[%s1 + $0x78] sm:$0xf]
    %v61 = vld [vmem:[%s1 + $0x7c] sm:$0xf]
    %v62 = vld [vmem:[%s1 + $0x80] sm:$0xf]
    %v63 = vld [vmem:[%s1 + $0x84] sm:$0xf]
    %v64 = vld [vmem:[%s1 + $0x88] sm:$0xf]
    %v65 = vld [vmem:[%s1 + $0x8c] sm:$0xf]
    %v66 = vld [vmem:[%s1 + $0x90] sm:$0xf]
    %v67 = vld [vmem:[%s1 + $0x94] sm:$0xf]
    %v68 = vld [vmem:[%s1 + $0x98] sm:$0xf]
    %v69 = vld [vmem:[%s1 + $0x9c] sm:$0xf]
    %v70 = vld [vmem:[%s1 + $0xa0] sm:$0xf]
    %v71 = vld [vmem:[%s1 + $0xa4] sm:$0xf]
    %v72 = vld [vmem:[%s1 + $0xa8] sm:$0xf]
    %v73 = vld [vmem:[%s1 + $0xac] sm:$0xf]
    %v74 = vld [vmem:[%s1 + $0xb0] sm:$0xf]
    %v75 = vld [vmem:[%s1 + $0xb4] sm:$0xf]
    %v76 = vld [vmem:[%s1 + $0xb8] sm:$0xf]
    %v77 = vld [vmem:[%s1 + $0xbc] sm:$0xf]
    %v78 = vld [vmem:[%s1 + $0xc0] sm:$0xf]
    %v79 = vld [vmem:[%s1 + $0xc4] sm:$0xf]
    %v80 = vld [vmem:[%s1 + $0xc8] sm:$0xf]
    %v81 = vld [vmem:[%s1 + $0xcc] sm:$0xf]
    %v82 = vld [vmem:[%s1 + $0xd0] sm:$0xf]
    %v83 = vld [vmem:[%s1 + $0xd4] sm:$0xf]
    %v84 = vld [vmem:[%s1 + $0xd8] sm:$0xf]
    %v85 = vld [vmem:[%s1 + $0xdc] sm:$0xf]
    %v86 = vld [vmem:[%s1 + $0xe0] sm:$0xf]
    %v87 = vld [vmem:[%s1 + $0xe4] sm:$0xf]
    %v88 = vld [vmem:[%s1 + $0xe8] sm:$0xf]
    %v89 = vld [vmem:[%s1 + $0xec] sm:$0xf]
    %v90 = vld [vmem:[%s1 + $0xf0] sm:$0xf]
    %v91 = vld [vmem:[%s1 + $0xf4] sm:$0xf]
    %v92 = vld [vmem:[%s1 + $0xf8] sm:$0xf]
    %v93 = vld [vmem:[%s1 + $0xfc] sm:$0xf]
    %v94 = vld [vmem:[%s1 + $0x100] sm:$0xf]
    %v95 = vld [vmem:[%s1 + $0x104] sm:$0xf]
    %v96 = vld [vmem:[%s1 + $0x108] sm:$0xf]
    %v97 = vld [vmem:[%s1 + $0x10c] sm:$0xf]
    %v98 = vld [vmem:[%s1 + $0x110] sm:$0xf]
    %v99 = vld [vmem:[%s1 + $0x114] sm:$0xf]
    %v100 = vld [vmem:[%s1 + $0x118] sm:$0xf]
    %v101 = vld [vmem:[%s1 + $0x11c] sm:$0xf]
    %v102 = vld [vmem:[%s1 + $0x120] sm:$0xf]
    %v103 = vld [vmem:[%s1 + $0x124] sm:$0xf]
    %v104 = vld [vmem:[%s1 + $0x128] sm:$0xf]
    %v105 = vld [vmem:[%s1 + $0x12c] sm:$0xf]
    %v106 = vld [vmem:[%s1 + $0x130] sm:$0xf]
    %v107 = vld [vmem:[%s1 + $0x134] sm:$0xf]
    %v108 = vld [vmem:[%s1 + $0x138] sm:$0xf]
    %v109 = vld [vmem:[%s1 + $0x13c] sm:$0xf]
    %v110 = vld [vmem:[%s1 + $0x140] sm:$0xf]
    %v111 = vld [vmem:[%s1 + $0x144] sm:$0xf]
    %v112 = vld [vmem:[%s1 + $0x148] sm:$0xf]
    %v113 = vld [vmem:[%s1 + $0x14c] sm:$0xf]
    %v114 = vld [vmem:[%s1 + $0x150] sm:$0xf]
    %v115 = vld [vmem:[%s1 + $0x154] sm:$0xf]
    %v116 = vld [vmem:[%s1 + $0x158] sm:$0xf]
    %v117 = vld [vmem:[%s1 + $0x15c] sm:$0xf]
    %v118 = vld [vmem:[%s1 + $0x160] sm:$0xf]
    %v119 = vld [vmem:[%s1 + $0x164] sm:$0xf]
    %v120 = vld [vmem:[%s1 + $0x168] sm:$0xf]
    %v121 = vld [vmem:[%s1 + $0x16c] sm:$0xf]
    %v122 = vld [vmem:[%s1 + $0x170] sm:$0xf]
    %v123 = vld [vmem:[%s1 + $0x174] sm:$0xf]
    %v124 = vld [vmem:[%s1 + $0x178] sm:$0xf]
    %v125 = vld [vmem:[%s1 + $0x17c] sm:$0xf]
    %v126 = vld [vmem:[%s1 + $0x180] sm:$0xf]
    %v127 = vld [vmem:[%s1 + $0x184] sm:$0xf]
    %v128 = vld [vmem:[%s1 + $0x188] sm:$0xf]
    %v129 = vld [vmem:[%s1 + $0x18c] sm:$0xf]
    %v130 = vld [vmem:[%s1 + $0x190] sm:$0xf]
    %v131 = vld [vmem:[%s1 + $0x194] sm:$0xf]
    %v132 = vld [vmem:[%s1 + $0x198] sm:$0xf]
    %v133 = vld [vmem:[%s1 + $0x19c] sm:$0xf]
    %v134 = vld [vmem:[%s1 + $0x1a0] sm:$0xf]
    %v135 = vld [vmem:[%s1 + $0x1a4] sm:$0xf]
    %v136 = vld [vmem:[%s1 + $0x1a8] sm:$0xf]
    %v137 = vld [vmem:[%s1 + $0x1ac] sm:$0xf]
    %v138 = vld [vmem:[%s1 + $0x1b0] sm:$0xf]
    %v139 = vld [vmem:[%s1 + $0x1b4] sm:$0xf]
    %v140 = vld [vmem:[%s1 + $0x1b8] sm:$0xf]
    %v141 = vld [vmem:[%s1 + $0x1bc] sm:$0xf]
    %v142 = vld [vmem:[%s1 + $0x1c0] sm:$0xf]
    %v143 = vld [vmem:[%s1 + $0x1c4] sm:$0xf]
    %v144 = vld [vmem:[%s1 + $0x1c8] sm:$0xf]
    %v145 = vld [vmem:[%s1 + $0x1cc] sm:$0xf]
    %v146 = vld [vmem:[%s1 + $0x1d0] sm:$0xf]
    %v147 = vld [vmem:[%s1 + $0x1d4] sm:$0xf]
    %v148 = vld [vmem:[%s1 + $0x1d8] sm:$0xf]
    %v149 = vld [vmem:[%s1 + $0x1dc] sm:$0xf]
    %v150 = vld [vmem:[%s1 + $0x1e0] sm:$0xf]
    %v151 = vld [vmem:[%s1 + $0x1e4] sm:$0xf]
    %v152 = vld [vmem:[%s1 + $0x1e8] sm:$0xf]
    %v153 = vld [vmem:[%s1 + $0x1ec] sm:$0xf]
    %v154 = vld [vmem:[%s1 + $0x1f0] sm:$0xf]
    %v155 = vld [vmem:[%s1 + $0x1f4] sm:$0xf]
    %v156 = vld [vmem:[%s1 + $0x1f8] sm:$0xf]
    %v157 = vld [vmem:[%s1 + $0x1fc] sm:$0xf]
    %v158 = vld [vmem:[%s1 + $0x200] sm:$0xf]
    %v159 = vld [vmem:[%s1 + $0x204] sm:$0xf]
    %v160 = vld [vmem:[%s1 + $0x208] sm:$0xf]
    %v161 = vld [vmem:[%s1 + $0x20c] sm:$0xf]
    %v162 = vld [vmem:[%s1 + $0x210] sm:$0xf]
    %v163 = vld [vmem:[%s1 + $0x214] sm:$0xf]
    %v164 = vld [vmem:[%s1 + $0x218] sm:$0xf]
    %v165 = vld [vmem:[%s1 + $0x21c] sm:$0xf]
    %v166 = vld [vmem:[%s1 + $0x220] sm:$0xf]
    %v167 = vld [vmem:[%s1 + $0x224] sm:$0xf]
    %v168 = vld [vmem:[%s1 + $0x228] sm:$0xf]
    %v169 = vld [vmem:[%s1 + $0x22c] sm:$0xf]
    %v170 = vld [vmem:[%s1 + $0x230] sm:$0xf]
    %v171 = vld [vmem:[%s1 + $0x234] sm:$0xf]
    %v172 = vld [vmem:[%s1 + $0x238] sm:$0xf]
    %v173 = vld [vmem:[%s1 + $0x23c] sm:$0xf]
    %v174 = vld [vmem:[%s1 + $0x240] sm:$0xf]
    %v175 = vld [vmem:[%s1 + $0x244] sm:$0xf]
    %v176 = vld [vmem:[%s1 + $0x248] sm:$0xf]
    %v177 = vld [vmem:[%s1 + $0x24c] sm:$0xf]
    %v178 = vld [vmem:[%s1 + $0x250] sm:$0xf]
    %v179 = vld [vmem:[%s1 + $0x254] sm:$0xf]
    %v180 = vld [vmem:[%s1 + $0x258] sm:$0xf]
    %v181 = vld [vmem:[%s1 + $0x25c] sm:$0xf]
    %v182 = vld [vmem:[%s1 + $0x260] sm:$0xf]
    %v183 = vld [vmem:[%s1 + $0x264] sm:$0xf]
    %v184 = vld [vmem:[%s1 + $0x268] sm:$0xf]
    %v185 = vld [vmem:[%s1 + $0x26c] sm:$0xf]
    %v186 = vld [vmem:[%s1 + $0x270] sm:$0xf]
    %v187 = vld [vmem:[%s1 + $0x274] sm:$0xf]
    %v188 = vld [vmem:[%s1 + $0x278] sm:$0xf]
    %v189 = vld [vmem:[%s1 + $0x27c] sm:$0xf]
    %v190 = vld [vmem:[%s1 + $0x280] sm:$0xf]
    %v191 = vld [vmem:[%s1 + $0x284] sm:$0xf]
    %v192 = vld [vmem:[%s1 + $0x288] sm:$0xf]
    %v193 = vld [vmem:[%s1 + $0x28c] sm:$0xf]
    %v194 = vld [vmem:[%s1 + $0x290] sm:$0xf]
    %v195 = vld [vmem:[%s1 + $0x294] sm:$0xf]
    %v196 = vld [vmem:[%s1 + $0x298] sm:$0xf]
    %v197 = vld [vmem:[%s1 + $0x29c] sm:$0xf]
    %v198 = vld [vmem:[%s1 + $0x2a0] sm:$0xf]
    %v199 = vld [vmem:[%s1 + $0x2a4] sm:$0xf]
    %v200 = vld [vmem:[%s1 + $0x2a8] sm:$0xf]
    %v201 = vld [vmem:[%s1 + $0x2ac] sm:$0xf]
    %v202 = vld [vmem:[%s1 + $0x2b0] sm:$0xf]
    %v203 = vld [vmem:[%s1 + $0x2b4] sm:$0xf]
    %v204 = vld [vmem:[%s1 + $0x2b8] sm:$0xf]
    %v205 = vld [vmem:[%s1 + $0x2bc] sm:$0xf]
    %v206 = vld [vmem:[%s1 + $0x2c0] sm:$0xf]
    %v207 = vld [vmem:[%s1 + $0x2c4] sm:$0xf]
    %v208 = vld [vmem:[%s1 + $0x2c8] sm:$0xf]
    %v209 = vld [vmem:[%s1 + $0x2cc] sm:$0xf]
    %v210 = vld [vmem:[%s1 + $0x2d0] sm:$0xf]
    %v211 = vld [vmem:[%s1 + $0x2d4] sm:$0xf]
    %v212 = vld [vmem:[%s1 + $0x2d8] sm:$0xf]
    %v213 = vld [vmem:[%s1 + $0x2dc] sm:$0xf]
    %v214 = vld [vmem:[%s1 + $0x2e0] sm:$0xf]
    %v215 = vld [vmem:[%s1 + $0x2e4] sm:$0xf]
    %v216 = vld [vmem:[%s1 + $0x2e8] sm:$0xf]
    %v217 = vld [vmem:[%s1 + $0x2ec] sm:$0xf]
    %v218 = vld [vmem:[%s1 + $0x2f0] sm:$0xf]
    %v219 = vld [vmem:[%s1 + $0x2f4] sm:$0xf]
    %v220 = vld [vmem:[%s1 + $0x2f8] sm:$0xf]
    %v221 = vld [vmem:[%s1 + $0x2fc] sm:$0xf]
    %v222 = vld [vmem:[%s1 + $0x300] sm:$0xf]
    %v223 = vld [vmem:[%s1 + $0x304] sm:$0xf]
    %v224 = vld [vmem:[%s1 + $0x308] sm:$0xf]
    %v225 = vld [vmem:[%s1 + $0x30c] sm:$0xf]
    %v226 = vld [vmem:[%s1 + $0x310] sm:$0xf]
    %v227 = vld [vmem:[%s1 + $0x314] sm:$0xf]
    %v228 = vld [vmem:[%s1 + $0x318] sm:$0xf]
    %v229 = vld [vmem:[%s1 + $0x31c] sm:$0xf]
    %v230 = vld [vmem:[%s1 + $0x320] sm:$0xf]
    %v231 = vld [vmem:[%s1 + $0x324] sm:$0xf]
    %v232 = vld [vmem:[%s1 + $0x328] sm:$0xf]
    %v233 = vld [vmem:[%s1 + $0x32c] sm:$0xf]
    %v234 = vld [vmem:[%s1 + $0x330] sm:$0xf]
    %v235 = vld [vmem:[%s1 + $0x334] sm:$0xf]
    %v236 = vld [vmem:[%s1 + $0x338] sm:$0xf]
    %v237 = vld [vmem:[%s1 + $0x33c] sm:$0xf]
    %v238 = vld [vmem:[%s1 + $0x340] sm:$0xf]
    %v239 = vld [vmem:[%s1 + $0x344] sm:$0xf]
    %v240 = vld [vmem:[%s1 + $0x348] sm:$0xf]
    %v241 = vld [vmem:[%s1 + $0x34c] sm:$0xf]
    %v242 = vld [vmem:[%s1 + $0x350] sm:$0xf]
    %v243 = vld [vmem:[%s1 + $0x354] sm:$0xf]
    %v244 = vld [vmem:[%s1 + $0x358] sm:$0xf]
    %v245 = vld [vmem:[%s1 + $0x35c] sm:$0xf]
    %v246 = vld [vmem:[%s1 + $0x360] sm:$0xf]
    %v247 = vld [vmem:[%s1 + $0x364] sm:$0xf]
    %v248 = vld [vmem:[%s1 + $0x368] sm:$0xf]
    %v249 = vld [vmem:[%s1 + $0x36c] sm:$0xf]
    %v250 = vld [vmem:[%s1 + $0x370] sm:$0xf]
    %v251 = vld [vmem:[%s1 + $0x374] sm:$0xf]
    %v252 = vld [vmem:[%s1 + $0x378] sm:$0xf]
    %v253 = vld [vmem:[%s1 + $0x37c] sm:$0xf]
    %v254 = vld [vmem:[%s1 + $0x380] sm:$0xf]
    %v255 = vld [vmem:[%s1 + $0x384] sm:$0xf]
    %v256 = vld [vmem:[%s1 + $0x388] sm:$0xf]
    %v257 = vld [vmem:[%s1 + $0x38c] sm:$0xf]
    %v258 = vld [vmem:[%s1 + $0x390] sm:$0xf]
    %v259 = vld [vmem:[%s1 + $0x394] sm:$0xf]
    %v260 = vld [vmem:[%s1 + $0x398] sm:$0xf]
    %v261 = vld [vmem:[%s1 + $0x39c] sm:$0xf]
    %v262 = vld [vmem:[%s1 + $0x3a0] sm:$0xf]
    %v263 = vld [vmem:[%s1 + $0x3a4] sm:$0xf]
    %v264 = vld [vmem:[%s1 + $0x3a8] sm:$0xf]
    %v265 = vld [vmem:[%s1 + $0x3ac] sm:$0xf]
    %v266 = vld [vmem:[%s1 + $0x3b0] sm:$0xf]
    %v267 = vld [vmem:[%s1 + $0x3b4] sm:$0xf]
    %v268 = vld [vmem:[%s1 + $0x3b8] sm:$0xf]
    %v269 = vld [vmem:[%s1 + $0x3bc] sm:$0xf]
    %v270 = vld [vmem:[%s1 + $0x3c0] sm:$0xf]
    %v271 = vld [vmem:[%s1 + $0x3c4] sm:$0xf]
    %v272 = vld [vmem:[%s1 + $0x3c8] sm:$0xf]
    %v273 = vld [vmem:[%s1 + $0x3cc] sm:$0xf]
    %v274 = vld [vmem:[%s1 + $0x3d0] sm:$0xf]
    %v275 = vld [vmem:[%s1 + $0x3d4] sm:$0xf]
    %v276 = vld [vmem:[%s1 + $0x3d8] sm:$0xf]
    %v277 = vld [vmem:[%s1 + $0x3dc] sm:$0xf]
    %v278 = vld [vmem:[%s1 + $0x3e0] sm:$0xf]
    %v279 = vld [vmem:[%s1 + $0x3e4] sm:$0xf]
    %v280 = vld [vmem:[%s1 + $0x3e8] sm:$0xf]
    %v281 = vld [vmem:[%s1 + $0x3ec] sm:$0xf]
    %v282 = vld [vmem:[%s1 + $0x3f0] sm:$0xf]
    %v283 = vld [vmem:[%s1 + $0x3f4] sm:$0xf]
    %v284 = vld [vmem:[%s1 + $0x3f8] sm:$0xf]
    %v285 = vld [vmem:[%s1 + $0x3fc] sm:$0xf]
    %v286 = vld [vmem:[%s2] sm:$0x1]
    %v288 = vperm.slane %v286, 0
    %v298 = vunpack.c.l.b16 %v22
    %v299 = vunpack.c.h.b16 %v22
    %v300 = vunpack.c.l.b16 %v23
    %v301 = vunpack.c.h.b16 %v23
    %v302 = vunpack.c.l.b16 %v24
    %v303 = vunpack.c.h.b16 %v24
    %v304 = vunpack.c.l.b16 %v25
    %v305 = vunpack.c.h.b16 %v25
    %v306 = vunpack.c.l.b16 %v26
    %v307 = vunpack.c.h.b16 %v26
    %v308 = vunpack.c.l.b16 %v27
    %v309 = vunpack.c.h.b16 %v27
    %v310 = vunpack.c.l.b16 %v28
    %v311 = vunpack.c.h.b16 %v28
    %v312 = vunpack.c.l.b16 %v29
    %v313 = vunpack.c.h.b16 %v29
    %v314 = vpack.c.b16 %v298, %v298
    %v315 = vpack.c.b16 %v299, %v299
    %v316 = vpack.c.b16 %v300, %v300
    %v317 = vpack.c.b16 %v301, %v301
    %v318 = vpack.c.b16 %v302, %v302
    %v319 = vpack.c.b16 %v303, %v303
    %v320 = vpack.c.b16 %v304, %v304
    %v321 = vpack.c.b16 %v305, %v305
    %v322 = vpack.c.b16 %v306, %v306
    %v323 = vpack.c.b16 %v307, %v307
    %v324 = vpack.c.b16 %v308, %v308
    %v325 = vpack.c.b16 %v309, %v309
    %v326 = vpack.c.b16 %v310, %v310
    %v327 = vpack.c.b16 %v311, %v311
    %v328 = vpack.c.b16 %v312, %v312
    %v329 = vpack.c.b16 %v313, %v313
    %v602 = vunpack.c.l.b16 %v30
    %v603 = vunpack.c.l.b16 %v31
    %v604 = vunpack.c.l.b16 %v32
    %v605 = vunpack.c.l.b16 %v33
    %v606 = vunpack.c.l.b16 %v34
    %v607 = vunpack.c.l.b16 %v35
    %v608 = vunpack.c.l.b16 %v36
    %v609 = vunpack.c.l.b16 %v37
    %v610 = vunpack.c.l.b16 %v38
    %v611 = vunpack.c.l.b16 %v39
    %v612 = vunpack.c.l.b16 %v40
    %v613 = vunpack.c.l.b16 %v41
    %v614 = vunpack.c.l.b16 %v42
    %v615 = vunpack.c.l.b16 %v43
    %v616 = vunpack.c.l.b16 %v44
    %v617 = vunpack.c.l.b16 %v45
    %v618 = vunpack.c.l.b16 %v46
    %v619 = vunpack.c.l.b16 %v47
    %v620 = vunpack.c.l.b16 %v48
    %v621 = vunpack.c.l.b16 %v49
    %v622 = vunpack.c.l.b16 %v50
    %v623 = vunpack.c.l.b16 %v51
    %v624 = vunpack.c.l.b16 %v52
    %v625 = vunpack.c.l.b16 %v53
    %v626 = vunpack.c.l.b16 %v54
    %v627 = vunpack.c.l.b16 %v55
    %v628 = vunpack.c.l.b16 %v56
    %v629 = vunpack.c.l.b16 %v57
    %v630 = vunpack.c.l.b16 %v58
    %v631 = vunpack.c.l.b16 %v59
    %v632 = vunpack.c.l.b16 %v60
    %v633 = vunpack.c.l.b16 %v61
    %v634 = vunpack.c.l.b16 %v62
    %v635 = vunpack.c.l.b16 %v63
    %v636 = vunpack.c.l.b16 %v64
    %v637 = vunpack.c.l.b16 %v65
    %v638 = vunpack.c.l.b16 %v66
    %v639 = vunpack.c.l.b16 %v67
    %v640 = vunpack.c.l.b16 %v68
    %v641 = vunpack.c.l.b16 %v69
    %v642 = vunpack.c.l.b16 %v70
    %v643 = vunpack.c.l.b16 %v71
    %v644 = vunpack.c.l.b16 %v72
    %v645 = vunpack.c.l.b16 %v73
    %v646 = vunpack.c.l.b16 %v74
    %v647 = vunpack.c.l.b16 %v75
    %v648 = vunpack.c.l.b16 %v76
    %v649 = vunpack.c.l.b16 %v77
    %v650 = vunpack.c.l.b16 %v78
    %v651 = vunpack.c.l.b16 %v79
    %v652 = vunpack.c.l.b16 %v80
    %v653 = vunpack.c.l.b16 %v81
    %v654 = vunpack.c.l.b16 %v82
    %v655 = vunpack.c.l.b16 %v83
    %v656 = vunpack.c.l.b16 %v84
    %v657 = vunpack.c.l.b16 %v85
    %v658 = vunpack.c.l.b16 %v86
    %v659 = vunpack.c.l.b16 %v87
    %v660 = vunpack.c.l.b16 %v88
    %v661 = vunpack.c.l.b16 %v89
    %v662 = vunpack.c.l.b16 %v90
    %v663 = vunpack.c.l.b16 %v91
    %v664 = vunpack.c.l.b16 %v92
    %v665 = vunpack.c.l.b16 %v93
    %v666 = vunpack.c.l.b16 %v94
    %v667 = vunpack.c.l.b16 %v95
    %v668 = vunpack.c.l.b16 %v96
    %v669 = vunpack.c.l.b16 %v97
    %v670 = vunpack.c.l.b16 %v98
    %v671 = vunpack.c.l.b16 %v99
    %v672 = vunpack.c.l.b16 %v100
    %v673 = vunpack.c.l.b16 %v101
    %v674 = vunpack.c.l.b16 %v102
    %v675 = vunpack.c.l.b16 %v103
    %v676 = vunpack.c.l.b16 %v104
    %v677 = vunpack.c.l.b16 %v105
    %v678 = vunpack.c.l.b16 %v106
    %v679 = vunpack.c.l.b16 %v107
    %v680 = vunpack.c.l.b16 %v108
    %v681 = vunpack.c.l.b16 %v109
    %v682 = vunpack.c.l.b16 %v110
    %v683 = vunpack.c.l.b16 %v111
    %v684 = vunpack.c.l.b16 %v112
    %v685 = vunpack.c.l.b16 %v113
    %v686 = vunpack.c.l.b16 %v114
    %v687 = vunpack.c.l.b16 %v115
    %v688 = vunpack.c.l.b16 %v116
    %v689 = vunpack.c.l.b16 %v117
    %v690 = vunpack.c.l.b16 %v118
    %v691 = vunpack.c.l.b16 %v119
    %v692 = vunpack.c.l.b16 %v120
    %v693 = vunpack.c.l.b16 %v121
    %v694 = vunpack.c.l.b16 %v122
    %v695 = vunpack.c.l.b16 %v123
    %v696 = vunpack.c.l.b16 %v124
    %v697 = vunpack.c.l.b16 %v125
    %v698 = vunpack.c.l.b16 %v126
    %v699 = vunpack.c.l.b16 %v127
    %v700 = vunpack.c.l.b16 %v128
    %v701 = vunpack.c.l.b16 %v129
    %v702 = vunpack.c.l.b16 %v130
    %v703 = vunpack.c.l.b16 %v131
    %v704 = vunpack.c.l.b16 %v132
    %v705 = vunpack.c.l.b16 %v133
    %v706 = vunpack.c.l.b16 %v134
    %v707 = vunpack.c.l.b16 %v135
    %v708 = vunpack.c.l.b16 %v136
    %v709 = vunpack.c.l.b16 %v137
    %v710 = vunpack.c.l.b16 %v138
    %v711 = vunpack.c.l.b16 %v139
    %v712 = vunpack.c.l.b16 %v140
    %v713 = vunpack.c.l.b16 %v141
    %v714 = vunpack.c.l.b16 %v142
    %v715 = vunpack.c.l.b16 %v143
    %v716 = vunpack.c.l.b16 %v144
    %v717 = vunpack.c.l.b16 %v145
    %v718 = vunpack.c.l.b16 %v146
    %v719 = vunpack.c.l.b16 %v147
    %v720 = vunpack.c.l.b16 %v148
    %v721 = vunpack.c.l.b16 %v149
    %v722 = vunpack.c.l.b16 %v150
    %v723 = vunpack.c.l.b16 %v151
    %v724 = vunpack.c.l.b16 %v152
    %v725 = vunpack.c.l.b16 %v153
    %v726 = vunpack.c.l.b16 %v154
    %v727 = vunpack.c.l.b16 %v155
    %v728 = vunpack.c.l.b16 %v156
    %v729 = vunpack.c.l.b16 %v157
    %v730 = vunpack.c.l.b16 %v158
    %v731 = vunpack.c.l.b16 %v159
    %v732 = vunpack.c.l.b16 %v160
    %v733 = vunpack.c.l.b16 %v161
    %v734 = vunpack.c.l.b16 %v162
    %v735 = vunpack.c.l.b16 %v163
    %v736 = vunpack.c.l.b16 %v164
    %v737 = vunpack.c.l.b16 %v165
    %v738 = vunpack.c.l.b16 %v166
    %v739 = vunpack.c.l.b16 %v167
    %v740 = vunpack.c.l.b16 %v168
    %v741 = vunpack.c.l.b16 %v169
    %v742 = vunpack.c.l.b16 %v170
    %v743 = vunpack.c.l.b16 %v171
    %v744 = vunpack.c.l.b16 %v172
    %v745 = vunpack.c.l.b16 %v173
    %v746 = vunpack.c.l.b16 %v174
    %v747 = vunpack.c.l.b16 %v175
    %v748 = vunpack.c.l.b16 %v176
    %v749 = vunpack.c.l.b16 %v177
    %v750 = vunpack.c.l.b16 %v178
    %v751 = vunpack.c.l.b16 %v179
    %v752 = vunpack.c.l.b16 %v180
    %v753 = vunpack.c.l.b16 %v181
    %v754 = vunpack.c.l.b16 %v182
    %v755 = vunpack.c.l.b16 %v183
    %v756 = vunpack.c.l.b16 %v184
    %v757 = vunpack.c.l.b16 %v185
    %v758 = vunpack.c.l.b16 %v186
    %v759 = vunpack.c.l.b16 %v187
    %v760 = vunpack.c.l.b16 %v188
    %v761 = vunpack.c.l.b16 %v189
    %v762 = vunpack.c.l.b16 %v190
    %v763 = vunpack.c.l.b16 %v191
    %v764 = vunpack.c.l.b16 %v192
    %v765 = vunpack.c.l.b16 %v193
    %v766 = vunpack.c.l.b16 %v194
    %v767 = vunpack.c.l.b16 %v195
    %v768 = vunpack.c.l.b16 %v196
    %v769 = vunpack.c.l.b16 %v197
    %v770 = vunpack.c.l.b16 %v198
    %v771 = vunpack.c.l.b16 %v199
    %v772 = vunpack.c.l.b16 %v200
    %v773 = vunpack.c.l.b16 %v201
    %v774 = vunpack.c.l.b16 %v202
    %v775 = vunpack.c.l.b16 %v203
    %v776 = vunpack.c.l.b16 %v204
    %v777 = vunpack.c.l.b16 %v205
    %v778 = vunpack.c.l.b16 %v206
    %v779 = vunpack.c.l.b16 %v207
    %v780 = vunpack.c.l.b16 %v208
    %v781 = vunpack.c.l.b16 %v209
    %v782 = vunpack.c.l.b16 %v210
    %v783 = vunpack.c.l.b16 %v211
    %v784 = vunpack.c.l.b16 %v212
    %v785 = vunpack.c.l.b16 %v213
    %v786 = vunpack.c.l.b16 %v214
    %v787 = vunpack.c.l.b16 %v215
    %v788 = vunpack.c.l.b16 %v216
    %v789 = vunpack.c.l.b16 %v217
    %v790 = vunpack.c.l.b16 %v218
    %v791 = vunpack.c.l.b16 %v219
    %v792 = vunpack.c.l.b16 %v220
    %v793 = vunpack.c.l.b16 %v221
    %v794 = vunpack.c.l.b16 %v222
    %v795 = vunpack.c.l.b16 %v223
    %v796 = vunpack.c.l.b16 %v224
    %v797 = vunpack.c.l.b16 %v225
    %v798 = vunpack.c.l.b16 %v226
    %v799 = vunpack.c.l.b16 %v227
    %v800 = vunpack.c.l.b16 %v228
    %v801 = vunpack.c.l.b16 %v229
    %v802 = vunpack.c.l.b16 %v230
    %v803 = vunpack.c.l.b16 %v231
    %v804 = vunpack.c.l.b16 %v232
    %v805 = vunpack.c.l.b16 %v233
    %v806 = vunpack.c.l.b16 %v234
    %v807 = vunpack.c.l.b16 %v235
    %v808 = vunpack.c.l.b16 %v236
    %v809 = vunpack.c.l.b16 %v237
    %v810 = vunpack.c.l.b16 %v238
    %v811 = vunpack.c.l.b16 %v239
    %v812 = vunpack.c.l.b16 %v240
    %v813 = vunpack.c.l.b16 %v241
    %v814 = vunpack.c.l.b16 %v242
    %v815 = vunpack.c.l.b16 %v243
    %v816 = vunpack.c.l.b16 %v244
    %v817 = vunpack.c.l.b16 %v245
    %v818 = vunpack.c.l.b16 %v246
    %v819 = vunpack.c.l.b16 %v247
    %v820 = vunpack.c.l.b16 %v248
    %v821 = vunpack.c.l.b16 %v249
    %v822 = vunpack.c.l.b16 %v250
    %v823 = vunpack.c.l.b16 %v251
    %v824 = vunpack.c.l.b16 %v252
    %v825 = vunpack.c.l.b16 %v253
    %v826 = vunpack.c.l.b16 %v254
    %v827 = vunpack.c.l.b16 %v255
    %v828 = vunpack.c.l.b16 %v256
    %v829 = vunpack.c.l.b16 %v257
    %v830 = vunpack.c.l.b16 %v258
    %v831 = vunpack.c.l.b16 %v259
    %v832 = vunpack.c.l.b16 %v260
    %v833 = vunpack.c.l.b16 %v261
    %v834 = vunpack.c.l.b16 %v262
    %v835 = vunpack.c.l.b16 %v263
    %v836 = vunpack.c.l.b16 %v264
    %v837 = vunpack.c.l.b16 %v265
    %v838 = vunpack.c.l.b16 %v266
    %v839 = vunpack.c.l.b16 %v267
    %v840 = vunpack.c.l.b16 %v268
    %v841 = vunpack.c.l.b16 %v269
    %v842 = vunpack.c.l.b16 %v270
    %v843 = vunpack.c.l.b16 %v271
    %v844 = vunpack.c.l.b16 %v272
    %v845 = vunpack.c.l.b16 %v273
    %v846 = vunpack.c.l.b16 %v274
    %v847 = vunpack.c.l.b16 %v275
    %v848 = vunpack.c.l.b16 %v276
    %v849 = vunpack.c.l.b16 %v277
    %v850 = vunpack.c.l.b16 %v278
    %v851 = vunpack.c.l.b16 %v279
    %v852 = vunpack.c.l.b16 %v280
    %v853 = vunpack.c.l.b16 %v281
    %v854 = vunpack.c.l.b16 %v282
    %v855 = vunpack.c.l.b16 %v283
    %v856 = vunpack.c.l.b16 %v284
    %v857 = vunpack.c.l.b16 %v285
    %v858 = vpack.c.b16 %v603, %v602
    %v859 = vpack.c.b16 %v605, %v604
    %v860 = vpack.c.b16 %v607, %v606
    %v861 = vpack.c.b16 %v609, %v608
    %v862 = vpack.c.b16 %v611, %v610
    %v863 = vpack.c.b16 %v613, %v612
    %v864 = vpack.c.b16 %v615, %v614
    %v865 = vpack.c.b16 %v617, %v616
    %v866 = vpack.c.b16 %v619, %v618
    %v867 = vpack.c.b16 %v621, %v620
    %v868 = vpack.c.b16 %v623, %v622
    %v869 = vpack.c.b16 %v625, %v624
    %v870 = vpack.c.b16 %v627, %v626
    %v871 = vpack.c.b16 %v629, %v628
    %v872 = vpack.c.b16 %v631, %v630
    %v873 = vpack.c.b16 %v633, %v632
    %v874 = vpack.c.b16 %v635, %v634
    %v875 = vpack.c.b16 %v637, %v636
    %v876 = vpack.c.b16 %v639, %v638
    %v877 = vpack.c.b16 %v641, %v640
    %v878 = vpack.c.b16 %v643, %v642
    %v879 = vpack.c.b16 %v645, %v644
    %v880 = vpack.c.b16 %v647, %v646
    %v881 = vpack.c.b16 %v649, %v648
    %v882 = vpack.c.b16 %v651, %v650
    %v883 = vpack.c.b16 %v653, %v652
    %v884 = vpack.c.b16 %v655, %v654
    %v885 = vpack.c.b16 %v657, %v656
    %v886 = vpack.c.b16 %v659, %v658
    %v887 = vpack.c.b16 %v661, %v660
    %v888 = vpack.c.b16 %v663, %v662
    %v889 = vpack.c.b16 %v665, %v664
    %v890 = vpack.c.b16 %v667, %v666
    %v891 = vpack.c.b16 %v669, %v668
    %v892 = vpack.c.b16 %v671, %v670
    %v893 = vpack.c.b16 %v673, %v672
    %v894 = vpack.c.b16 %v675, %v674
    %v895 = vpack.c.b16 %v677, %v676
    %v896 = vpack.c.b16 %v679, %v678
    %v897 = vpack.c.b16 %v681, %v680
    %v898 = vpack.c.b16 %v683, %v682
    %v899 = vpack.c.b16 %v685, %v684
    %v900 = vpack.c.b16 %v687, %v686
    %v901 = vpack.c.b16 %v689, %v688
    %v902 = vpack.c.b16 %v691, %v690
    %v903 = vpack.c.b16 %v693, %v692
    %v904 = vpack.c.b16 %v695, %v694
    %v905 = vpack.c.b16 %v697, %v696
    %v906 = vpack.c.b16 %v699, %v698
    %v907 = vpack.c.b16 %v701, %v700
    %v908 = vpack.c.b16 %v703, %v702
    %v909 = vpack.c.b16 %v705, %v704
    %v910 = vpack.c.b16 %v707, %v706
    %v911 = vpack.c.b16 %v709, %v708
    %v912 = vpack.c.b16 %v711, %v710
    %v913 = vpack.c.b16 %v713, %v712
    %v914 = vpack.c.b16 %v715, %v714
    %v915 = vpack.c.b16 %v717, %v716
    %v916 = vpack.c.b16 %v719, %v718
    %v917 = vpack.c.b16 %v721, %v720
    %v918 = vpack.c.b16 %v723, %v722
    %v919 = vpack.c.b16 %v725, %v724
    %v920 = vpack.c.b16 %v727, %v726
    %v921 = vpack.c.b16 %v729, %v728
    %v922 = vpack.c.b16 %v731, %v730
    %v923 = vpack.c.b16 %v733, %v732
    %v924 = vpack.c.b16 %v735, %v734
    %v925 = vpack.c.b16 %v737, %v736
    %v926 = vpack.c.b16 %v739, %v738
    %v927 = vpack.c.b16 %v741, %v740
    %v928 = vpack.c.b16 %v743, %v742
    %v929 = vpack.c.b16 %v745, %v744
    %v930 = vpack.c.b16 %v747, %v746
    %v931 = vpack.c.b16 %v749, %v748
    %v932 = vpack.c.b16 %v751, %v750
    %v933 = vpack.c.b16 %v753, %v752
    %v934 = vpack.c.b16 %v755, %v754
    %v935 = vpack.c.b16 %v757, %v756
    %v936 = vpack.c.b16 %v759, %v758
    %v937 = vpack.c.b16 %v761, %v760
    %v938 = vpack.c.b16 %v763, %v762
    %v939 = vpack.c.b16 %v765, %v764
    %v940 = vpack.c.b16 %v767, %v766
    %v941 = vpack.c.b16 %v769, %v768
    %v942 = vpack.c.b16 %v771, %v770
    %v943 = vpack.c.b16 %v773, %v772
    %v944 = vpack.c.b16 %v775, %v774
    %v945 = vpack.c.b16 %v777, %v776
    %v946 = vpack.c.b16 %v779, %v778
    %v947 = vpack.c.b16 %v781, %v780
    %v948 = vpack.c.b16 %v783, %v782
    %v949 = vpack.c.b16 %v785, %v784
    %v950 = vpack.c.b16 %v787, %v786
    %v951 = vpack.c.b16 %v789, %v788
    %v952 = vpack.c.b16 %v791, %v790
    %v953 = vpack.c.b16 %v793, %v792
    %v954 = vpack.c.b16 %v795, %v794
    %v955 = vpack.c.b16 %v797, %v796
    %v956 = vpack.c.b16 %v799, %v798
    %v957 = vpack.c.b16 %v801, %v800
    %v958 = vpack.c.b16 %v803, %v802
    %v959 = vpack.c.b16 %v805, %v804
    %v960 = vpack.c.b16 %v807, %v806
    %v961 = vpack.c.b16 %v809, %v808
    %v962 = vpack.c.b16 %v811, %v810
    %v963 = vpack.c.b16 %v813, %v812
    %v964 = vpack.c.b16 %v815, %v814
    %v965 = vpack.c.b16 %v817, %v816
    %v966 = vpack.c.b16 %v819, %v818
    %v967 = vpack.c.b16 %v821, %v820
    %v968 = vpack.c.b16 %v823, %v822
    %v969 = vpack.c.b16 %v825, %v824
    %v970 = vpack.c.b16 %v827, %v826
    %v971 = vpack.c.b16 %v829, %v828
    %v972 = vpack.c.b16 %v831, %v830
    %v973 = vpack.c.b16 %v833, %v832
    %v974 = vpack.c.b16 %v835, %v834
    %v975 = vpack.c.b16 %v837, %v836
    %v976 = vpack.c.b16 %v839, %v838
    %v977 = vpack.c.b16 %v841, %v840
    %v978 = vpack.c.b16 %v843, %v842
    %v979 = vpack.c.b16 %v845, %v844
    %v980 = vpack.c.b16 %v847, %v846
    %v981 = vpack.c.b16 %v849, %v848
    %v982 = vpack.c.b16 %v851, %v850
    %v983 = vpack.c.b16 %v853, %v852
    %v984 = vpack.c.b16 %v855, %v854
    %v985 = vpack.c.b16 %v857, %v856
    %1114 = vmatpush.bf16.msra.mxu0 %v865
    %1115 = vmatpush.bf16.msra.mxu0 %v864
    %1116 = vmatpush.bf16.msra.mxu0 %v863
    %1117 = vmatpush.bf16.msra.mxu0 %v862
    %1118 = vmatpush.bf16.msra.mxu0 %v861
    %1119 = vmatpush.bf16.msra.mxu0 %v860
    %1120 = vmatpush.bf16.msra.mxu0 %v859
    %1121 = vmatpush.bf16.msra.mxu0 %v858
    %1122 = vmatmul.bf16.gmra.mxu0 %v314
    %v1123 = vpop.f32.mrf.mxu0
    %v1124 = vadd.f32 %v288, %v1123
    %v1125 = vpop.f32.mrf.mxu0
    %1126 = vdwg.mxu0
    %1127 = vmatpush.bf16.msra.mxu0 %v873
    %1128 = vmatpush.bf16.msra.mxu0 %v872
    %1129 = vmatpush.bf16.msra.mxu0 %v871
    %1130 = vmatpush.bf16.msra.mxu0 %v870
    %1131 = vmatpush.bf16.msra.mxu0 %v869
    %1132 = vmatpush.bf16.msra.mxu0 %v868
    %1133 = vmatpush.bf16.msra.mxu0 %v867
    %1134 = vmatpush.bf16.msra.mxu0 %v866
    %1135 = vmatmul.bf16.gmra.mxu0 %v315
    %v1136 = vpop.f32.mrf.mxu0
    %v1137 = vadd.f32 %v1124, %v1136
    %v1138 = vpop.f32.mrf.mxu0
    %1139 = vdwg.mxu0
    %1140 = vmatpush.bf16.msra.mxu0 %v881
    %1141 = vmatpush.bf16.msra.mxu0 %v880
    %1142 = vmatpush.bf16.msra.mxu0 %v879
    %1143 = vmatpush.bf16.msra.mxu0 %v878
    %1144 = vmatpush.bf16.msra.mxu0 %v877
    %1145 = vmatpush.bf16.msra.mxu0 %v876
    %1146 = vmatpush.bf16.msra.mxu0 %v875
    %1147 = vmatpush.bf16.msra.mxu0 %v874
    %1148 = vmatmul.bf16.gmra.mxu0 %v316
    %v1149 = vpop.f32.mrf.mxu0
    %v1150 = vadd.f32 %v1137, %v1149
    %v1151 = vpop.f32.mrf.mxu0
    %1152 = vdwg.mxu0
    %1153 = vmatpush.bf16.msra.mxu0 %v889
    %1154 = vmatpush.bf16.msra.mxu0 %v888
    %1155 = vmatpush.bf16.msra.mxu0 %v887
    %1156 = vmatpush.bf16.msra.mxu0 %v886
    %1157 = vmatpush.bf16.msra.mxu0 %v885
    %1158 = vmatpush.bf16.msra.mxu0 %v884
    %1159 = vmatpush.bf16.msra.mxu0 %v883
    %1160 = vmatpush.bf16.msra.mxu0 %v882
    %1161 = vmatmul.bf16.gmra.mxu0 %v317
    %v1162 = vpop.f32.mrf.mxu0
    %v1163 = vadd.f32 %v1150, %v1162
    %v1164 = vpop.f32.mrf.mxu0
    %1165 = vdwg.mxu0
    %1166 = vmatpush.bf16.msra.mxu0 %v897
    %1167 = vmatpush.bf16.msra.mxu0 %v896
    %1168 = vmatpush.bf16.msra.mxu0 %v895
    %1169 = vmatpush.bf16.msra.mxu0 %v894
    %1170 = vmatpush.bf16.msra.mxu0 %v893
    %1171 = vmatpush.bf16.msra.mxu0 %v892
    %1172 = vmatpush.bf16.msra.mxu0 %v891
    %1173 = vmatpush.bf16.msra.mxu0 %v890
    %1174 = vmatmul.bf16.gmra.mxu0 %v318
    %v1175 = vpop.f32.mrf.mxu0
    %v1176 = vadd.f32 %v1163, %v1175
    %v1177 = vpop.f32.mrf.mxu0
    %1178 = vdwg.mxu0
    %1179 = vmatpush.bf16.msra.mxu0 %v905
    %1180 = vmatpush.bf16.msra.mxu0 %v904
    %1181 = vmatpush.bf16.msra.mxu0 %v903
    %1182 = vmatpush.bf16.msra.mxu0 %v902
    %1183 = vmatpush.bf16.msra.mxu0 %v901
    %1184 = vmatpush.bf16.msra.mxu0 %v900
    %1185 = vmatpush.bf16.msra.mxu0 %v899
    %1186 = vmatpush.bf16.msra.mxu0 %v898
    %1187 = vmatmul.bf16.gmra.mxu0 %v319
    %v1188 = vpop.f32.mrf.mxu0
    %v1189 = vadd.f32 %v1176, %v1188
    %v1190 = vpop.f32.mrf.mxu0
    %1191 = vdwg.mxu0
    %1192 = vmatpush.bf16.msra.mxu0 %v913
    %1193 = vmatpush.bf16.msra.mxu0 %v912
    %1194 = vmatpush.bf16.msra.mxu0 %v911
    %1195 = vmatpush.bf16.msra.mxu0 %v910
    %1196 = vmatpush.bf16.msra.mxu0 %v909
    %1197 = vmatpush.bf16.msra.mxu0 %v908
    %1198 = vmatpush.bf16.msra.mxu0 %v907
    %1199 = vmatpush.bf16.msra.mxu0 %v906
    %1200 = vmatmul.bf16.gmra.mxu0 %v320
    %v1201 = vpop.f32.mrf.mxu0
    %v1202 = vadd.f32 %v1189, %v1201
    %v1203 = vpop.f32.mrf.mxu0
    %1204 = vdwg.mxu0
    %1205 = vmatpush.bf16.msra.mxu0 %v921
    %1206 = vmatpush.bf16.msra.mxu0 %v920
    %1207 = vmatpush.bf16.msra.mxu0 %v919
    %1208 = vmatpush.bf16.msra.mxu0 %v918
    %1209 = vmatpush.bf16.msra.mxu0 %v917
    %1210 = vmatpush.bf16.msra.mxu0 %v916
    %1211 = vmatpush.bf16.msra.mxu0 %v915
    %1212 = vmatpush.bf16.msra.mxu0 %v914
    %1213 = vmatmul.bf16.gmra.mxu0 %v321
    %v1214 = vpop.f32.mrf.mxu0
    %v1215 = vadd.f32 %v1202, %v1214
    %v1216 = vpop.f32.mrf.mxu0
    %1217 = vdwg.mxu0
    %1218 = vmatpush.bf16.msra.mxu0 %v929
    %1219 = vmatpush.bf16.msra.mxu0 %v928
    %1220 = vmatpush.bf16.msra.mxu0 %v927
    %1221 = vmatpush.bf16.msra.mxu0 %v926
    %1222 = vmatpush.bf16.msra.mxu0 %v925
    %1223 = vmatpush.bf16.msra.mxu0 %v924
    %1224 = vmatpush.bf16.msra.mxu0 %v923
    %1225 = vmatpush.bf16.msra.mxu0 %v922
    %1226 = vmatmul.bf16.gmra.mxu0 %v322
    %v1227 = vpop.f32.mrf.mxu0
    %v1228 = vadd.f32 %v1215, %v1227
    %v1229 = vpop.f32.mrf.mxu0
    %1230 = vdwg.mxu0
    %1231 = vmatpush.bf16.msra.mxu0 %v937
    %1232 = vmatpush.bf16.msra.mxu0 %v936
    %1233 = vmatpush.bf16.msra.mxu0 %v935
    %1234 = vmatpush.bf16.msra.mxu0 %v934
    %1235 = vmatpush.bf16.msra.mxu0 %v933
    %1236 = vmatpush.bf16.msra.mxu0 %v932
    %1237 = vmatpush.bf16.msra.mxu0 %v931
    %1238 = vmatpush.bf16.msra.mxu0 %v930
    %1239 = vmatmul.bf16.gmra.mxu0 %v323
    %v1240 = vpop.f32.mrf.mxu0
    %v1241 = vadd.f32 %v1228, %v1240
    %v1242 = vpop.f32.mrf.mxu0
    %1243 = vdwg.mxu0
    %1244 = vmatpush.bf16.msra.mxu0 %v945
    %1245 = vmatpush.bf16.msra.mxu0 %v944
    %1246 = vmatpush.bf16.msra.mxu0 %v943
    %1247 = vmatpush.bf16.msra.mxu0 %v942
    %1248 = vmatpush.bf16.msra.mxu0 %v941
    %1249 = vmatpush.bf16.msra.mxu0 %v940
    %1250 = vmatpush.bf16.msra.mxu0 %v939
    %1251 = vmatpush.bf16.msra.mxu0 %v938
    %1252 = vmatmul.bf16.gmra.mxu0 %v324
    %v1253 = vpop.f32.mrf.mxu0
    %v1254 = vadd.f32 %v1241, %v1253
    %v1255 = vpop.f32.mrf.mxu0
    %1256 = vdwg.mxu0
    %1257 = vmatpush.bf16.msra.mxu0 %v953
    %1258 = vmatpush.bf16.msra.mxu0 %v952
    %1259 = vmatpush.bf16.msra.mxu0 %v951
    %1260 = vmatpush.bf16.msra.mxu0 %v950
    %1261 = vmatpush.bf16.msra.mxu0 %v949
    %1262 = vmatpush.bf16.msra.mxu0 %v948
    %1263 = vmatpush.bf16.msra.mxu0 %v947
    %1264 = vmatpush.bf16.msra.mxu0 %v946
    %1265 = vmatmul.bf16.gmra.mxu0 %v325
    %v1266 = vpop.f32.mrf.mxu0
    %v1267 = vadd.f32 %v1254, %v1266
    %v1268 = vpop.f32.mrf.mxu0
    %1269 = vdwg.mxu0
    %1270 = vmatpush.bf16.msra.mxu0 %v961
    %1271 = vmatpush.bf16.msra.mxu0 %v960
    %1272 = vmatpush.bf16.msra.mxu0 %v959
    %1273 = vmatpush.bf16.msra.mxu0 %v958
    %1274 = vmatpush.bf16.msra.mxu0 %v957
    %1275 = vmatpush.bf16.msra.mxu0 %v956
    %1276 = vmatpush.bf16.msra.mxu0 %v955
    %1277 = vmatpush.bf16.msra.mxu0 %v954
    %1278 = vmatmul.bf16.gmra.mxu0 %v326
    %v1279 = vpop.f32.mrf.mxu0
    %v1280 = vadd.f32 %v1267, %v1279
    %v1281 = vpop.f32.mrf.mxu0
    %1282 = vdwg.mxu0
    %1283 = vmatpush.bf16.msra.mxu0 %v969
    %1284 = vmatpush.bf16.msra.mxu0 %v968
    %1285 = vmatpush.bf16.msra.mxu0 %v967
    %1286 = vmatpush.bf16.msra.mxu0 %v966
    %1287 = vmatpush.bf16.msra.mxu0 %v965
    %1288 = vmatpush.bf16.msra.mxu0 %v964
    %1289 = vmatpush.bf16.msra.mxu0 %v963
    %1290 = vmatpush.bf16.msra.mxu0 %v962
    %1291 = vmatmul.bf16.gmra.mxu0 %v327
    %v1292 = vpop.f32.mrf.mxu0
    %v1293 = vadd.f32 %v1280, %v1292
    %v1294 = vpop.f32.mrf.mxu0
    %1295 = vdwg.mxu0
    %1296 = vmatpush.bf16.msra.mxu0 %v977
    %1297 = vmatpush.bf16.msra.mxu0 %v976
    %1298 = vmatpush.bf16.msra.mxu0 %v975
    %1299 = vmatpush.bf16.msra.mxu0 %v974
    %1300 = vmatpush.bf16.msra.mxu0 %v973
    %1301 = vmatpush.bf16.msra.mxu0 %v972
    %1302 = vmatpush.bf16.msra.mxu0 %v971
    %1303 = vmatpush.bf16.msra.mxu0 %v970
    %1304 = vmatmul.bf16.gmra.mxu0 %v328
    %v1305 = vpop.f32.mrf.mxu0
    %v1306 = vadd.f32 %v1293, %v1305
    %v1307 = vpop.f32.mrf.mxu0
    %1308 = vdwg.mxu0
    %1309 = vmatpush.bf16.msra.mxu0 %v985
    %1310 = vmatpush.bf16.msra.mxu0 %v984
    %1311 = vmatpush.bf16.msra.mxu0 %v983
    %1312 = vmatpush.bf16.msra.mxu0 %v982
    %1313 = vmatpush.bf16.msra.mxu0 %v981
    %1314 = vmatpush.bf16.msra.mxu0 %v980
    %1315 = vmatpush.bf16.msra.mxu0 %v979
    %1316 = vmatpush.bf16.msra.mxu0 %v978
    %1317 = vmatmul.bf16.gmra.mxu0 %v329
    %v1318 = vpop.f32.mrf.mxu0
    %v1319 = vadd.f32 %v1306, %v1318
    %v1320 = vpop.f32.mrf.mxu0
    %1321 = vdwg.mxu0
    %v1322 = vmax.f32 %v1319, 0.0
    %v1323 = vpack.c.bf16 %v1322, %v1322
    %v1324 = vld [vmem:[%s3] sm:$0xf]
    %v1325 = vld [vmem:[%s3 + $0x4] sm:$0xf]
    %v1326 = vld [vmem:[%s3 + $0x8] sm:$0xf]
    %v1327 = vld [vmem:[%s3 + $0xc] sm:$0xf]
    %v1328 = vld [vmem:[%s4] sm:$0x1]
    %v1330 = vperm.slane %v1328, 0
    %v1336 = vunpack.c.l.b16 %v1324
    %v1337 = vunpack.c.l.b16 %v1325
    %v1338 = vunpack.c.l.b16 %v1326
    %v1339 = vunpack.c.l.b16 %v1327
    %v1340 = vpack.c.b16 %v1337, %v1336
    %v1341 = vpack.c.b16 %v1339, %v1338
    %vm1344 = vcmask 261120
    %v1346 = vsel %vm1344, %v1323, 0
    %1348 = vmatpush.bf16.msra.mxu0 0
    %1349 = vmatpush.bf16.msra.mxu0 0
    %1350 = vmatpush.bf16.msra.mxu0 0
    %1351 = vmatpush.bf16.msra.mxu0 0
    %1352 = vmatpush.bf16.msra.mxu0 0
    %1353 = vmatpush.bf16.msra.mxu0 0
    %1354 = vmatpush.bf16.msra.mxu0 %v1341
    %1355 = vmatpush.bf16.msra.mxu0 %v1340
    %1356 = vmatmul.bf16.gmra.mxu0 %v1346
    %v1357 = vpop.f32.mrf.mxu0
    %v1358 = vadd.f32 %v1330, %v1357
    %v1359 = vpop.f32.mrf.mxu0
    %1360 = vdwg.mxu0
    %1361 = vst [vmem:[#allocation2] sm:$0xff] %v1358
    // Predicated region
    $region22: #{tpu_custom_call.1} parent=1 // pred_check
      _
    $region23: #{tpu_custom_call.1} parent=1 // pred_check_branch
      %1363 = sbr.rel (0) target = $region25
    $region24: #{tpu_custom_call.1} parent=1 // pred_region
      %1365 = vsyncadd [#allocation3], 0
      %s1367 = sshll.u32 [#allocation2], 4
      %s1368 = int_to_ptr.vmem [resolvable:$true] %s1367
      %s1369 = sshll.u32 %s5, 4
      %s1370 = int_to_ptr.hbm [resolvable:$true] %s1369
      %1372 = dma.vmem_to_hbm [thread:$0]  %s1368, 128, %s1370, [#allocation3]
    $region25: #{tpu_custom_call.1} parent=1 // pred_fallthru
      _
    // Predicated region
    $region26: #{tpu_custom_call.1} parent=1 // pred_check
      _
    $region27: #{tpu_custom_call.1} parent=1 // pred_check_branch
      %1374 = sbr.rel (0) target = $region29
    $region28: #{tpu_custom_call.1} parent=1 // pred_region
      %1376 = dma.done [#allocation3], 128
    $region29: #{tpu_custom_call.1} parent=1 // pred_fallthru
      _
    %1377 = vsyncpa [#allocation3], 1

</llo_original>
